<compile_context>
chip_gen: v5e
topology: v5e:2x2
jax: 0.10.0
libtpu: 0.0.40
codegen_flags: <defaults>
</compile_context>

<pallas_src>
import jax
import jax.numpy as jnp
from jax.experimental import pallas as pl
from jax.experimental.pallas import tpu as pltpu


def _make_conv3x3_mxu_kernel(cin, cout, H, W):
    HW = H * W

    def kernel(x_ref, w_ref, m_ref, o_ref, acc_ref):
        # x_ref  : (1, cin, H*W)   VMEM  flattened NCHW input (unpadded in HBM)
        # w_ref  : (9, cout, cin)  VMEM  per-tap weight matrices, t = kh*3 + kw
        # m_ref  : (9, 1, H*W)     VMEM  0/1 boundary masks per tap
        # o_ref  : (1, cout, H*W)  VMEM  conv output (NCHW flattened)
        # acc_ref: (cout, H*W)     VMEM  f32 accumulator scratch
        x = x_ref[0]                                   # (cin, HW)
        acc_ref[...] = jnp.zeros_like(acc_ref)

        # Only the 9 taps are unrolled; channels contract inside the MXU matmul.
        for kh in range(3):
            for kw in range(3):
                t = kh * 3 + kw
                off = (kh - 1) * W + (kw - 1)          # flat-index offset of this tap
                if off == 0:
                    xs = x
                else:
                    # rolled[p] = x[p + off]; wrap-around positions get zeroed below.
                    xs = pltpu.roll(x, (-off) % HW, axis=1)
                contrib = jnp.dot(w_ref[t], xs,
                                  preferred_element_type=jnp.float32)   # (cout, HW) on MXU
                if (kh, kw) != (1, 1):
                    contrib = contrib * m_ref[t]        # (1, HW) broadcast over cout
                acc_ref[...] += contrib

        o_ref[0] = acc_ref[...].astype(o_ref.dtype)

    return kernel


def _tap_masks(H, W):
    """(9, 1, H*W) f32 masks: 0 where tap (kh, kw) would read outside the image."""
    row = jnp.arange(H, dtype=jnp.int32)[:, None]
    col = jnp.arange(W, dtype=jnp.int32)[None, :]
    masks = []
    for kh in range(3):
        for kw in range(3):
            m = jnp.ones((H, W), jnp.float32)
            if kh == 0:
                m = m * (row >= 1).astype(jnp.float32)
            if kh == 2:
                m = m * (row <= H - 2).astype(jnp.float32)
            if kw == 0:
                m = m * (col >= 1).astype(jnp.float32)
            if kw == 2:
                m = m * (col <= W - 2).astype(jnp.float32)
            masks.append(m.reshape(1, H * W))
    return jnp.stack(masks, axis=0)


def conv3x3_pallas(x, weight):
    """x: (N, Cin, H, W) f32, weight: (Cout, Cin, 3, 3) f32 -> (N, Cout, H, W) f32."""
    N, Cin, H, W = x.shape
    Cout = weight.shape[0]
    HW = H * W

    x_flat = x.reshape(N, Cin, HW).astype(jnp.float32)        # contiguous -> free reshape
    # Per-tap (Cout, Cin) weight matrices, tap index t = kh*3 + kw.
    w_taps = jnp.transpose(weight, (2, 3, 0, 1)).reshape(9, Cout, Cin).astype(jnp.float32)
    masks = _tap_masks(H, W)

    kernel = _make_conv3x3_mxu_kernel(Cin, Cout, H, W)

    cost = pl.CostEstimate(
        flops=2 * N * Cout * Cin * 9 * HW,
        transcendentals=0,
        bytes_accessed=4 * (N * (Cin + Cout) * HW + 9 * Cout * Cin + 9 * HW),
    )

    y_flat = pl.pallas_call(
        kernel,
        out_shape=jax.ShapeDtypeStruct((N, Cout, HW), jnp.float32),
        grid=(N,),
        in_specs=[
            pl.BlockSpec((1, Cin, HW), lambda n: (n, 0, 0)),
            pl.BlockSpec((9, Cout, Cin), lambda n: (0, 0, 0)),   # resident across grid
            pl.BlockSpec((9, 1, HW), lambda n: (0, 0, 0)),       # resident across grid
        ],
        out_specs=pl.BlockSpec((1, Cout, HW), lambda n: (n, 0, 0)),
        scratch_shapes=[pltpu.VMEM((Cout, HW), jnp.float32)],
        compiler_params=pltpu.CompilerParams(
            dimension_semantics=("parallel",),
        ),
        cost_estimate=cost,
    )(x_flat, w_taps, masks)

    return y_flat.reshape(N, Cout, H, W)


def pixel_unshuffle(x, r=2):
    """PyTorch nn.PixelUnshuffle semantics on NCHW."""
    n, c, h, w = x.shape
    x = x.reshape(n, c, h // r, r, w // r, r)
    x = x.transpose(0, 1, 3, 5, 2, 4)          # (n, c, r, r, h//r, w//r)
    return x.reshape(n, c * r * r, h // r, w // r)


def downsample_forward(x, weight):
    """Downsample.forward: pad to even h/w, conv3x3 (n_feat -> n_feat//2), PixelUnshuffle(2)."""
    _, _, h, w = x.shape
    if h % 2 != 0:
        # F.pad(x, [0, 0, 1, 0]) -> pad height by 1 at the top
        x = jnp.pad(x, ((0, 0), (0, 0), (1, 0), (0, 0)))
    if w % 2 != 0:
        # F.pad(x, [1, 0, 0, 0]) -> pad width by 1 on the left
        x = jnp.pad(x, ((0, 0), (0, 0), (0, 0), (1, 0)))
    y = conv3x3_pallas(x, weight)
    return pixel_unshuffle(y, 2)


def _reference_forward(x, weight):
    """Pure-JAX reference (lax conv) for correctness check."""
    _, _, h, w = x.shape
    if h % 2 != 0:
        x = jnp.pad(x, ((0, 0), (0, 0), (1, 0), (0, 0)))
    if w % 2 != 0:
        x = jnp.pad(x, ((0, 0), (0, 0), (0, 0), (1, 0)))
    y = jax.lax.conv_general_dilated(
        x, weight, window_strides=(1, 1), padding=((1, 1), (1, 1)),
        dimension_numbers=("NCHW", "OIHW", "NCHW"))
    return pixel_unshuffle(y, 2)


if __name__ == "__main__":
    key = jax.random.PRNGKey(0)
    k_x, k_w = jax.random.split(key)

    N, n_feat, H, W = 2, 4, 16, 16          # n_feat -> n_feat//2 channels before unshuffle
    x = jax.random.normal(k_x, (N, n_feat, H, W), dtype=jnp.float32)
    # Conv2d(n_feat, n_feat//2, 3, bias=False) weights, deterministic init
    weight = (jax.random.normal(k_w, (n_feat // 2, n_feat, 3, 3), dtype=jnp.float32)
              * (1.0 / jnp.sqrt(n_feat * 9.0)))

    out = jax.block_until_ready(downsample_forward(x, weight))
    ref = jax.block_until_ready(_reference_forward(x, weight))

    assert out.shape == (N, (n_feat // 2) * 4, H // 2, W // 2), out.shape
    assert jnp.max(jnp.abs(out - ref)) < 1e-4, float(jnp.max(jnp.abs(out - ref)))

    print("KERNEL_OK")
</pallas_src>

<mosaic_0001>
module attributes {stable_mosaic.version = 11 : i64} {
  func.func @kernel(%arg0: i32, %arg1: memref<1x4x256xf32, #tpu.memory_space<vmem>>, %arg2: memref<9x2x4xf32, #tpu.memory_space<vmem>>, %arg3: memref<9x1x256xf32, #tpu.memory_space<vmem>>, %arg4: memref<1x2x256xf32, #tpu.memory_space<vmem>>, %arg5: memref<2x256xf32, #tpu.memory_space<vmem>>) attributes {dimension_semantics = [#tpu.dimension_semantics<parallel>], iteration_bounds = array<i64: 2>, scalar_prefetch = 0 : i64, scratch_operands = 1 : i64, tpu.core_type = #tpu.core_type<tc>, window_params = [{transform_indices = @transform_0, window_bounds = array<i64: 1, 4, 256>}, {pipeline_mode = #tpu.pipeline_mode<synchronous>, transform_indices = @transform_1, window_bounds = array<i64: 9, 2, 4>}, {pipeline_mode = #tpu.pipeline_mode<synchronous>, transform_indices = @transform_2, window_bounds = array<i64: 9, 1, 256>}, {transform_indices = @transform_3, window_bounds = array<i64: 1, 2, 256>}]} {
    %c0 = arith.constant 0 : index
    %c0_0 = arith.constant 0 : index
    %c0_1 = arith.constant 0 : index
    %0 = vector.load %arg1[%c0, %c0_0, %c0_1] : memref<1x4x256xf32, #tpu.memory_space<vmem>>, vector<1x4x256xf32>
    %1 = vector.shape_cast %0 : vector<1x4x256xf32> to vector<4x256xf32>
    %cst = arith.constant 0.000000e+00 : f32
    %2 = vector.broadcast %cst : f32 to vector<2x256xf32>
    %c0_2 = arith.constant 0 : index
    %c0_3 = arith.constant 0 : index
    %3 = vector.load %arg5[%c0_2, %c0_3] : memref<2x256xf32, #tpu.memory_space<vmem>>, vector<2x256xf32>
    tpu.vector_store %arg5[%c0_2, %c0_3], %2 {strides = array<i32>} : memref<2x256xf32, #tpu.memory_space<vmem>>, vector<2x256xf32>,
    %c17_i32 = arith.constant 17 : i32
    %4 = tpu.dynamic_rotate %1 by %c17_i32 dim 1 : vector<4x256xf32>, i32 -> vector<4x256xf32>
    %c0_4 = arith.constant 0 : index
    %c0_5 = arith.constant 0 : index
    %c0_6 = arith.constant 0 : index
    %5 = vector.load %arg2[%c0_4, %c0_5, %c0_6] : memref<9x2x4xf32, #tpu.memory_space<vmem>>, vector<1x2x4xf32>
    %6 = vector.shape_cast %5 : vector<1x2x4xf32> to vector<2x4xf32>
    %cst_7 = arith.constant dense<0.000000e+00> : vector<2x256xf32>
    %7 = tpu.matmul %6, %4, %cst_7 {dimension_numbers = #tpu.dot_dimension_numbers<[1], [0], [0], [1], [0, 0, 1, 1], [], []>} : vector<2x4xf32>, vector<4x256xf32>, vector<2x256xf32> -> vector<2x256xf32>
    %c0_8 = arith.constant 0 : index
    %c0_9 = arith.constant 0 : index
    %c0_10 = arith.constant 0 : index
    %8 = vector.load %arg3[%c0_8, %c0_9, %c0_10] : memref<9x1x256xf32, #tpu.memory_space<vmem>>, vector<1x1x256xf32>
    %9 = vector.shape_cast %8 : vector<1x1x256xf32> to vector<1x256xf32>
    %10 = vector.broadcast %9 : vector<1x256xf32> to vector<2x256xf32>
    %11 = arith.mulf %7, %10 : vector<2x256xf32>
    %c0_11 = arith.constant 0 : index
    %c0_12 = arith.constant 0 : index
    %12 = vector.load %arg5[%c0_11, %c0_12] : memref<2x256xf32, #tpu.memory_space<vmem>>, vector<2x256xf32>
    %13 = arith.addf %12, %11 : vector<2x256xf32>
    %c0_13 = arith.constant 0 : index
    %c0_14 = arith.constant 0 : index
    %14 = vector.load %arg5[%c0_13, %c0_14] : memref<2x256xf32, #tpu.memory_space<vmem>>, vector<2x256xf32>
    tpu.vector_store %arg5[%c0_13, %c0_14], %13 {strides = array<i32>} : memref<2x256xf32, #tpu.memory_space<vmem>>, vector<2x256xf32>,
    %c16_i32 = arith.constant 16 : i32
    %15 = tpu.dynamic_rotate %1 by %c16_i32 dim 1 : vector<4x256xf32>, i32 -> vector<4x256xf32>
    %c1 = arith.constant 1 : index
    %c0_15 = arith.constant 0 : index
    %c0_16 = arith.constant 0 : index
    %16 = vector.load %arg2[%c1, %c0_15, %c0_16] : memref<9x2x4xf32, #tpu.memory_space<vmem>>, vector<1x2x4xf32>
    %17 = vector.shape_cast %16 : vector<1x2x4xf32> to vector<2x4xf32>
    %cst_17 = arith.constant dense<0.000000e+00> : vector<2x256xf32>
    %18 = tpu.matmul %17, %15, %cst_17 {dimension_numbers = #tpu.dot_dimension_numbers<[1], [0], [0], [1], [0, 0, 1, 1], [], []>} : vector<2x4xf32>, vector<4x256xf32>, vector<2x256xf32> -> vector<2x256xf32>
    %c1_18 = arith.constant 1 : index
    %c0_19 = arith.constant 0 : index
    %c0_20 = arith.constant 0 : index
    %19 = vector.load %arg3[%c1_18, %c0_19, %c0_20] : memref<9x1x256xf32, #tpu.memory_space<vmem>>, vector<1x1x256xf32>
    %20 = vector.shape_cast %19 : vector<1x1x256xf32> to vector<1x256xf32>
    %21 = vector.broadcast %20 : vector<1x256xf32> to vector<2x256xf32>
    %22 = arith.mulf %18, %21 : vector<2x256xf32>
    %c0_21 = arith.constant 0 : index
    %c0_22 = arith.constant 0 : index
    %23 = vector.load %arg5[%c0_21, %c0_22] : memref<2x256xf32, #tpu.memory_space<vmem>>, vector<2x256xf32>
    %24 = arith.addf %23, %22 : vector<2x256xf32>
    %c0_23 = arith.constant 0 : index
    %c0_24 = arith.constant 0 : index
    %25 = vector.load %arg5[%c0_23, %c0_24] : memref<2x256xf32, #tpu.memory_space<vmem>>, vector<2x256xf32>
    tpu.vector_store %arg5[%c0_23, %c0_24], %24 {strides = array<i32>} : memref<2x256xf32, #tpu.memory_space<vmem>>, vector<2x256xf32>,
    %c15_i32 = arith.constant 15 : i32
    %26 = tpu.dynamic_rotate %1 by %c15_i32 dim 1 : vector<4x256xf32>, i32 -> vector<4x256xf32>
    %c2 = arith.constant 2 : index
    %c0_25 = arith.constant 0 : index
    %c0_26 = arith.constant 0 : index
    %27 = vector.load %arg2[%c2, %c0_25, %c0_26] : memref<9x2x4xf32, #tpu.memory_space<vmem>>, vector<1x2x4xf32>
    %28 = vector.shape_cast %27 : vector<1x2x4xf32> to vector<2x4xf32>
    %cst_27 = arith.constant dense<0.000000e+00> : vector<2x256xf32>
    %29 = tpu.matmul %28, %26, %cst_27 {dimension_numbers = #tpu.dot_dimension_numbers<[1], [0], [0], [1], [0, 0, 1, 1], [], []>} : vector<2x4xf32>, vector<4x256xf32>, vector<2x256xf32> -> vector<2x256xf32>
    %c2_28 = arith.constant 2 : index
    %c0_29 = arith.constant 0 : index
    %c0_30 = arith.constant 0 : index
    %30 = vector.load %arg3[%c2_28, %c0_29, %c0_30] : memref<9x1x256xf32, #tpu.memory_space<vmem>>, vector<1x1x256xf32>
    %31 = vector.shape_cast %30 : vector<1x1x256xf32> to vector<1x256xf32>
    %32 = vector.broadcast %31 : vector<1x256xf32> to vector<2x256xf32>
    %33 = arith.mulf %29, %32 : vector<2x256xf32>
    %c0_31 = arith.constant 0 : index
    %c0_32 = arith.constant 0 : index
    %34 = vector.load %arg5[%c0_31, %c0_32] : memref<2x256xf32, #tpu.memory_space<vmem>>, vector<2x256xf32>
    %35 = arith.addf %34, %33 : vector<2x256xf32>
    %c0_33 = arith.constant 0 : index
    %c0_34 = arith.constant 0 : index
    %36 = vector.load %arg5[%c0_33, %c0_34] : memref<2x256xf32, #tpu.memory_space<vmem>>, vector<2x256xf32>
    tpu.vector_store %arg5[%c0_33, %c0_34], %35 {strides = array<i32>} : memref<2x256xf32, #tpu.memory_space<vmem>>, vector<2x256xf32>,
    %c1_i32 = arith.constant 1 : i32
    %37 = tpu.dynamic_rotate %1 by %c1_i32 dim 1 : vector<4x256xf32>, i32 -> vector<4x256xf32>
    %c3 = arith.constant 3 : index
    %c0_35 = arith.constant 0 : index
    %c0_36 = arith.constant 0 : index
    %38 = vector.load %arg2[%c3, %c0_35, %c0_36] : memref<9x2x4xf32, #tpu.memory_space<vmem>>, vector<1x2x4xf32>
    %39 = vector.shape_cast %38 : vector<1x2x4xf32> to vector<2x4xf32>
    %cst_37 = arith.constant dense<0.000000e+00> : vector<2x256xf32>
    %40 = tpu.matmul %39, %37, %cst_37 {dimension_numbers = #tpu.dot_dimension_numbers<[1], [0], [0], [1], [0, 0, 1, 1], [], []>} : vector<2x4xf32>, vector<4x256xf32>, vector<2x256xf32> -> vector<2x256xf32>
    %c3_38 = arith.constant 3 : index
    %c0_39 = arith.constant 0 : index
    %c0_40 = arith.constant 0 : index
    %41 = vector.load %arg3[%c3_38, %c0_39, %c0_40] : memref<9x1x256xf32, #tpu.memory_space<vmem>>, vector<1x1x256xf32>
    %42 = vector.shape_cast %41 : vector<1x1x256xf32> to vector<1x256xf32>
    %43 = vector.broadcast %42 : vector<1x256xf32> to vector<2x256xf32>
    %44 = arith.mulf %40, %43 : vector<2x256xf32>
    %c0_41 = arith.constant 0 : index
    %c0_42 = arith.constant 0 : index
    %45 = vector.load %arg5[%c0_41, %c0_42] : memref<2x256xf32, #tpu.memory_space<vmem>>, vector<2x256xf32>
    %46 = arith.addf %45, %44 : vector<2x256xf32>
    %c0_43 = arith.constant 0 : index
    %c0_44 = arith.constant 0 : index
    %47 = vector.load %arg5[%c0_43, %c0_44] : memref<2x256xf32, #tpu.memory_space<vmem>>, vector<2x256xf32>
    tpu.vector_store %arg5[%c0_43, %c0_44], %46 {strides = array<i32>} : memref<2x256xf32, #tpu.memory_space<vmem>>, vector<2x256xf32>,
    %c4 = arith.constant 4 : index
    %c0_45 = arith.constant 0 : index
    %c0_46 = arith.constant 0 : index
    %48 = vector.load %arg2[%c4, %c0_45, %c0_46] : memref<9x2x4xf32, #tpu.memory_space<vmem>>, vector<1x2x4xf32>
    %49 = vector.shape_cast %48 : vector<1x2x4xf32> to vector<2x4xf32>
    %cst_47 = arith.constant dense<0.000000e+00> : vector<2x256xf32>
    %50 = tpu.matmul %49, %1, %cst_47 {dimension_numbers = #tpu.dot_dimension_numbers<[1], [0], [0], [1], [0, 0, 1, 1], [], []>} : vector<2x4xf32>, vector<4x256xf32>, vector<2x256xf32> -> vector<2x256xf32>
    %c0_48 = arith.constant 0 : index
    %c0_49 = arith.constant 0 : index
    %51 = vector.load %arg5[%c0_48, %c0_49] : memref<2x256xf32, #tpu.memory_space<vmem>>, vector<2x256xf32>
    %52 = arith.addf %51, %50 : vector<2x256xf32>
    %c0_50 = arith.constant 0 : index
    %c0_51 = arith.constant 0 : index
    %53 = vector.load %arg5[%c0_50, %c0_51] : memref<2x256xf32, #tpu.memory_space<vmem>>, vector<2x256xf32>
    tpu.vector_store %arg5[%c0_50, %c0_51], %52 {strides = array<i32>} : memref<2x256xf32, #tpu.memory_space<vmem>>, vector<2x256xf32>,
    %c255_i32 = arith.constant 255 : i32
    %54 = tpu.dynamic_rotate %1 by %c255_i32 dim 1 : vector<4x256xf32>, i32 -> vector<4x256xf32>
    %c5 = arith.constant 5 : index
    %c0_52 = arith.constant 0 : index
    %c0_53 = arith.constant 0 : index
    %55 = vector.load %arg2[%c5, %c0_52, %c0_53] : memref<9x2x4xf32, #tpu.memory_space<vmem>>, vector<1x2x4xf32>
    %56 = vector.shape_cast %55 : vector<1x2x4xf32> to vector<2x4xf32>
    %cst_54 = arith.constant dense<0.000000e+00> : vector<2x256xf32>
    %57 = tpu.matmul %56, %54, %cst_54 {dimension_numbers = #tpu.dot_dimension_numbers<[1], [0], [0], [1], [0, 0, 1, 1], [], []>} : vector<2x4xf32>, vector<4x256xf32>, vector<2x256xf32> -> vector<2x256xf32>
    %c5_55 = arith.constant 5 : index
    %c0_56 = arith.constant 0 : index
    %c0_57 = arith.constant 0 : index
    %58 = vector.load %arg3[%c5_55, %c0_56, %c0_57] : memref<9x1x256xf32, #tpu.memory_space<vmem>>, vector<1x1x256xf32>
    %59 = vector.shape_cast %58 : vector<1x1x256xf32> to vector<1x256xf32>
    %60 = vector.broadcast %59 : vector<1x256xf32> to vector<2x256xf32>
    %61 = arith.mulf %57, %60 : vector<2x256xf32>
    %c0_58 = arith.constant 0 : index
    %c0_59 = arith.constant 0 : index
    %62 = vector.load %arg5[%c0_58, %c0_59] : memref<2x256xf32, #tpu.memory_space<vmem>>, vector<2x256xf32>
    %63 = arith.addf %62, %61 : vector<2x256xf32>
    %c0_60 = arith.constant 0 : index
    %c0_61 = arith.constant 0 : index
    %64 = vector.load %arg5[%c0_60, %c0_61] : memref<2x256xf32, #tpu.memory_space<vmem>>, vector<2x256xf32>
    tpu.vector_store %arg5[%c0_60, %c0_61], %63 {strides = array<i32>} : memref<2x256xf32, #tpu.memory_space<vmem>>, vector<2x256xf32>,
    %c241_i32 = arith.constant 241 : i32
    %65 = tpu.dynamic_rotate %1 by %c241_i32 dim 1 : vector<4x256xf32>, i32 -> vector<4x256xf32>
    %c6 = arith.constant 6 : index
    %c0_62 = arith.constant 0 : index
    %c0_63 = arith.constant 0 : index
    %66 = vector.load %arg2[%c6, %c0_62, %c0_63] : memref<9x2x4xf32, #tpu.memory_space<vmem>>, vector<1x2x4xf32>
    %67 = vector.shape_cast %66 : vector<1x2x4xf32> to vector<2x4xf32>
    %cst_64 = arith.constant dense<0.000000e+00> : vector<2x256xf32>
    %68 = tpu.matmul %67, %65, %cst_64 {dimension_numbers = #tpu.dot_dimension_numbers<[1], [0], [0], [1], [0, 0, 1, 1], [], []>} : vector<2x4xf32>, vector<4x256xf32>, vector<2x256xf32> -> vector<2x256xf32>
    %c6_65 = arith.constant 6 : index
    %c0_66 = arith.constant 0 : index
    %c0_67 = arith.constant 0 : index
    %69 = vector.load %arg3[%c6_65, %c0_66, %c0_67] : memref<9x1x256xf32, #tpu.memory_space<vmem>>, vector<1x1x256xf32>
    %70 = vector.shape_cast %69 : vector<1x1x256xf32> to vector<1x256xf32>
    %71 = vector.broadcast %70 : vector<1x256xf32> to vector<2x256xf32>
    %72 = arith.mulf %68, %71 : vector<2x256xf32>
    %c0_68 = arith.constant 0 : index
    %c0_69 = arith.constant 0 : index
    %73 = vector.load %arg5[%c0_68, %c0_69] : memref<2x256xf32, #tpu.memory_space<vmem>>, vector<2x256xf32>
    %74 = arith.addf %73, %72 : vector<2x256xf32>
    %c0_70 = arith.constant 0 : index
    %c0_71 = arith.constant 0 : index
    %75 = vector.load %arg5[%c0_70, %c0_71] : memref<2x256xf32, #tpu.memory_space<vmem>>, vector<2x256xf32>
    tpu.vector_store %arg5[%c0_70, %c0_71], %74 {strides = array<i32>} : memref<2x256xf32, #tpu.memory_space<vmem>>, vector<2x256xf32>,
    %c240_i32 = arith.constant 240 : i32
    %76 = tpu.dynamic_rotate %1 by %c240_i32 dim 1 : vector<4x256xf32>, i32 -> vector<4x256xf32>
    %c7 = arith.constant 7 : index
    %c0_72 = arith.constant 0 : index
    %c0_73 = arith.constant 0 : index
    %77 = vector.load %arg2[%c7, %c0_72, %c0_73] : memref<9x2x4xf32, #tpu.memory_space<vmem>>, vector<1x2x4xf32>
    %78 = vector.shape_cast %77 : vector<1x2x4xf32> to vector<2x4xf32>
    %cst_74 = arith.constant dense<0.000000e+00> : vector<2x256xf32>
    %79 = tpu.matmul %78, %76, %cst_74 {dimension_numbers = #tpu.dot_dimension_numbers<[1], [0], [0], [1], [0, 0, 1, 1], [], []>} : vector<2x4xf32>, vector<4x256xf32>, vector<2x256xf32> -> vector<2x256xf32>
    %c7_75 = arith.constant 7 : index
    %c0_76 = arith.constant 0 : index
    %c0_77 = arith.constant 0 : index
    %80 = vector.load %arg3[%c7_75, %c0_76, %c0_77] : memref<9x1x256xf32, #tpu.memory_space<vmem>>, vector<1x1x256xf32>
    %81 = vector.shape_cast %80 : vector<1x1x256xf32> to vector<1x256xf32>
    %82 = vector.broadcast %81 : vector<1x256xf32> to vector<2x256xf32>
    %83 = arith.mulf %79, %82 : vector<2x256xf32>
    %c0_78 = arith.constant 0 : index
    %c0_79 = arith.constant 0 : index
    %84 = vector.load %arg5[%c0_78, %c0_79] : memref<2x256xf32, #tpu.memory_space<vmem>>, vector<2x256xf32>
    %85 = arith.addf %84, %83 : vector<2x256xf32>
    %c0_80 = arith.constant 0 : index
    %c0_81 = arith.constant 0 : index
    %86 = vector.load %arg5[%c0_80, %c0_81] : memref<2x256xf32, #tpu.memory_space<vmem>>, vector<2x256xf32>
    tpu.vector_store %arg5[%c0_80, %c0_81], %85 {strides = array<i32>} : memref<2x256xf32, #tpu.memory_space<vmem>>, vector<2x256xf32>,
    %c239_i32 = arith.constant 239 : i32
    %87 = tpu.dynamic_rotate %1 by %c239_i32 dim 1 : vector<4x256xf32>, i32 -> vector<4x256xf32>
    %c8 = arith.constant 8 : index
    %c0_82 = arith.constant 0 : index
    %c0_83 = arith.constant 0 : index
    %88 = vector.load %arg2[%c8, %c0_82, %c0_83] : memref<9x2x4xf32, #tpu.memory_space<vmem>>, vector<1x2x4xf32>
    %89 = vector.shape_cast %88 : vector<1x2x4xf32> to vector<2x4xf32>
    %cst_84 = arith.constant dense<0.000000e+00> : vector<2x256xf32>
    %90 = tpu.matmul %89, %87, %cst_84 {dimension_numbers = #tpu.dot_dimension_numbers<[1], [0], [0], [1], [0, 0, 1, 1], [], []>} : vector<2x4xf32>, vector<4x256xf32>, vector<2x256xf32> -> vector<2x256xf32>
    %c8_85 = arith.constant 8 : index
    %c0_86 = arith.constant 0 : index
    %c0_87 = arith.constant 0 : index
    %91 = vector.load %arg3[%c8_85, %c0_86, %c0_87] : memref<9x1x256xf32, #tpu.memory_space<vmem>>, vector<1x1x256xf32>
    %92 = vector.shape_cast %91 : vector<1x1x256xf32> to vector<1x256xf32>
    %93 = vector.broadcast %92 : vector<1x256xf32> to vector<2x256xf32>
    %94 = arith.mulf %90, %93 : vector<2x256xf32>
    %c0_88 = arith.constant 0 : index
    %c0_89 = arith.constant 0 : index
    %95 = vector.load %arg5[%c0_88, %c0_89] : memref<2x256xf32, #tpu.memory_space<vmem>>, vector<2x256xf32>
    %96 = arith.addf %95, %94 : vector<2x256xf32>
    %c0_90 = arith.constant 0 : index
    %c0_91 = arith.constant 0 : index
    %97 = vector.load %arg5[%c0_90, %c0_91] : memref<2x256xf32, #tpu.memory_space<vmem>>, vector<2x256xf32>
    tpu.vector_store %arg5[%c0_90, %c0_91], %96 {strides = array<i32>} : memref<2x256xf32, #tpu.memory_space<vmem>>, vector<2x256xf32>,
    %c0_92 = arith.constant 0 : index
    %c0_93 = arith.constant 0 : index
    %98 = vector.load %arg5[%c0_92, %c0_93] : memref<2x256xf32, #tpu.memory_space<vmem>>, vector<2x256xf32>
    %c0_94 = arith.constant 0 : index
    %c0_95 = arith.constant 0 : index
    %c0_96 = arith.constant 0 : index
    %99 = vector.load %arg4[%c0_94, %c0_95, %c0_96] : memref<1x2x256xf32, #tpu.memory_space<vmem>>, vector<1x2x256xf32>
    %100 = vector.shape_cast %99 : vector<1x2x256xf32> to vector<2x256xf32>
    %101 = vector.shape_cast %98 : vector<2x256xf32> to vector<1x2x256xf32>
    tpu.vector_store %arg4[%c0_94, %c0_95, %c0_96], %101 {strides = array<i32>} : memref<1x2x256xf32, #tpu.memory_space<vmem>>, vector<1x2x256xf32>,
    return
  }
  func.func @transform_0(%arg0: i32) -> (i32, i32, i32) {
    %c0_i32 = arith.constant 0 : i32
    %c0_i32_0 = arith.constant 0 : i32
    %c0_i32_1 = arith.constant 0 : i32
    return %arg0, %c0_i32, %c0_i32_0 : i32, i32, i32
  }
  func.func @transform_1(%arg0: i32) -> (i32, i32, i32) {
    %c0_i32 = arith.constant 0 : i32
    %c0_i32_0 = arith.constant 0 : i32
    %c0_i32_1 = arith.constant 0 : i32
    %c0_i32_2 = arith.constant 0 : i32
    return %c0_i32, %c0_i32_0, %c0_i32_1 : i32, i32, i32
  }
  func.func @transform_2(%arg0: i32) -> (i32, i32, i32) {
    %c0_i32 = arith.constant 0 : i32
    %c0_i32_0 = arith.constant 0 : i32
    %c0_i32_1 = arith.constant 0 : i32
    %c0_i32_2 = arith.constant 0 : i32
    return %c0_i32, %c0_i32_0, %c0_i32_1 : i32, i32, i32
  }
  func.func @transform_3(%arg0: i32) -> (i32, i32, i32) {
    %c0_i32 = arith.constant 0 : i32
    %c0_i32_0 = arith.constant 0 : i32
    %c0_i32_1 = arith.constant 0 : i32
    return %arg0, %c0_i32, %c0_i32_0 : i32, i32, i32
  }
}

</mosaic_0001>

<llo_original>
// kernel: tpu_custom_call.1
$region0: #{tpu_custom_call.1}
  #allocation0 [shape = 'u32[]', space=smem, size = 0x4, offset = 0x4, fixed_abs, tag = 'smem constant byte address 0x4 - core index']
  #allocation1 [shape = 'u32[72,128]{1,0:T(1,128)}', space=vmem, size = 0x9000, scoped, tag = 'internal scratch']
  #allocation2 [shape = 'f32[2,256]{1,0:T(2,128)}', space=vmem, size = 0x800, scoped, tag = 'scratch operand']
  %s0 = inlined_call_operand.hbm [shape: f32[2,4,256], index: 0, kind: input, shape index: {}]
  %s1 = inlined_call_operand.vmem [shape: f32[9,2,4], index: 1, kind: input, shape index: {}]
  %s2 = inlined_call_operand.vmem [shape: f32[9,1,256], index: 2, kind: input, shape index: {}]
  %s3 = inlined_call_operand.hbm [shape: f32[2,2,256], index: 3, kind: output, shape index: {}]
  %s4 = sld [smem:[#allocation0]]
  $region49: #{tpu_custom_call.1} parent=0
    _
  %s6 = ssub.s32 1, %s4
  %s7 = scalar_select 0, %s6, %s4
  $region1: #{tpu_custom_call.1} parent=0
    #allocation3 [shape = 'u8[8192]{0}', space=vmem, size = 0x2000, scoped, tag = 'input window, operand 0']
    #allocation4 [shape = 's32[2]{0}', space=sflag, size = 0x8, scoped, tag = 'scoped memory for tpu_custom_call.1']
    #allocation5 [shape = 's32[2]{0}', space=sflag, size = 0x8, scoped, tag = 'scoped memory for tpu_custom_call.1']
    #allocation6 [shape = 'u8[4096]{0}', space=vmem, size = 0x1000, scoped, tag = 'output window, operand 0']
    %8 = vsyncpa [#allocation4], 0
    %s9 = scalar_lea.sflag [#allocation4], 1
    %10 = vsyncpa %s9, 0
    %11 = vsyncpa [#allocation5], 0
    %s12 = scalar_lea.sflag [#allocation5], 1
    %13 = vsyncpa %s12, 0
    loop: start=0, step=1, limit=4
    $region2: #{tpu_custom_call.1} parent=1 // loop_pre_header
      _
    $region3: #{tpu_custom_call.1} parent=1 // loop_header
      %s15 = sphi 0, %s19
      %p16 = scmp.ge.s32.totalorder %s15, 4
      %s25 = sphi 0, %s27
      %s28 = sphi 0, %s25
      %s29 = sphi 0, %s28
      %s45 = sphi 0, %s29
      %s49 = sphi 0, %s49
      %s51 = sphi 0, %s49
      %s52 = sphi 0, %s51
      %s66 = sphi 0, %s52
      %s70 = sphi 0, %s70
      %s72 = sphi 0, %s70
      %s73 = sphi 0, %s72
      %s87 = sphi 0, %s73
      %s93 = sphi 0, %s95
      %s96 = sphi 0, %s93
      %s97 = sphi 0, %s96
      %s113 = sphi 0, %s97
    $region4: #{tpu_custom_call.1} parent=1 // loop_header_branch
      %18 = sbr.rel (%p16) target = $region8
    $region5: #{tpu_custom_call.1} parent=1 // loop_body
      %s20 = ssub.s32 %s15, 1
      %s21 = ssub.s32 %s15, 2
      %s22 = sadd.s32 %s15, 1
      %s23 = ssub.s32 %s15, %s22
      %p24 = scmp.eq.s32.totalorder %s23, 0
      %s26 = sadd.s32 %s25, 1
      %s27 = scalar_select %p24, %s25, %s26
      %p30 = pneg %p24
      %p31 = scmp.eq.s32.totalorder %s15, 1
      %p32 = por %p30, %p31
      %p33 = scmp.ne.s32.totalorder %s25, %s28
      %p34 = scmp.eq.s32.totalorder %s15, 0
      %p35 = por %p33, %p34
      %p36 = scmp.ne.s32.totalorder %s25, %s28
      %p37 = scmp.eq.s32.totalorder %s20, 1
      %p38 = por %p36, %p37
      %p39 = scmp.ne.s32.totalorder %s28, %s29
      %p40 = scmp.eq.s32.totalorder %s20, 0
      %p41 = por %p39, %p40
      %p42 = scmp.ne.s32.totalorder %s28, %s29
      %p43 = scmp.eq.s32.totalorder %s21, 1
      %p44 = por %p42, %p43
      %p46 = scmp.ne.s32.totalorder %s29, %s45
      %p47 = scmp.eq.s32.totalorder %s21, 0
      %p48 = por %p46, %p47
      %s50 = sadd.s32 %s49, 1
      %p53 = scmp.eq.s32.totalorder %s15, 1
      %p54 = scmp.ne.s32.totalorder %s49, %s51
      %p55 = scmp.eq.s32.totalorder %s15, 0
      %p56 = por %p54, %p55
      %p57 = scmp.ne.s32.totalorder %s49, %s51
      %p58 = scmp.eq.s32.totalorder %s20, 1
      %p59 = por %p57, %p58
      %p60 = scmp.ne.s32.totalorder %s51, %s52
      %p61 = scmp.eq.s32.totalorder %s20, 0
      %p62 = por %p60, %p61
      %p63 = scmp.ne.s32.totalorder %s51, %s52
      %p64 = scmp.eq.s32.totalorder %s21, 1
      %p65 = por %p63, %p64
      %p67 = scmp.ne.s32.totalorder %s52, %s66
      %p68 = scmp.eq.s32.totalorder %s21, 0
      %p69 = por %p67, %p68
      %s71 = sadd.s32 %s70, 1
      %p74 = scmp.eq.s32.totalorder %s15, 1
      %p75 = scmp.ne.s32.totalorder %s70, %s72
      %p76 = scmp.eq.s32.totalorder %s15, 0
      %p77 = por %p75, %p76
      %p78 = scmp.ne.s32.totalorder %s70, %s72
      %p79 = scmp.eq.s32.totalorder %s20, 1
      %p80 = por %p78, %p79
      %p81 = scmp.ne.s32.totalorder %s72, %s73
      %p82 = scmp.eq.s32.totalorder %s20, 0
      %p83 = por %p81, %p82
      %p84 = scmp.ne.s32.totalorder %s72, %s73
      %p85 = scmp.eq.s32.totalorder %s21, 1
      %p86 = por %p84, %p85
      %p88 = scmp.ne.s32.totalorder %s73, %s87
      %p89 = scmp.eq.s32.totalorder %s21, 0
      %p90 = por %p88, %p89
      %s91 = ssub.s32 %s15, %s22
      %p92 = scmp.eq.s32.totalorder %s91, 0
      %s94 = sadd.s32 %s93, 1
      %s95 = scalar_select %p92, %s93, %s94
      %p98 = pneg %p92
      %p99 = scmp.eq.s32.totalorder %s15, 1
      %p100 = por %p98, %p99
      %p101 = scmp.ne.s32.totalorder %s93, %s96
      %p102 = scmp.eq.s32.totalorder %s15, 0
      %p103 = por %p101, %p102
      %p104 = scmp.ne.s32.totalorder %s93, %s96
      %p105 = scmp.eq.s32.totalorder %s20, 1
      %p106 = por %p104, %p105
      %p107 = scmp.ne.s32.totalorder %s96, %s97
      %p108 = scmp.eq.s32.totalorder %s20, 0
      %p109 = por %p107, %p108
      %p110 = scmp.ne.s32.totalorder %s96, %s97
      %p111 = scmp.eq.s32.totalorder %s21, 1
      %p112 = por %p110, %p111
      %p114 = scmp.ne.s32.totalorder %s97, %s113
      %p115 = scmp.eq.s32.totalorder %s21, 0
      %p116 = por %p114, %p115
      %p117 = scmp.le.s32.totalorder 1, %s15
      %p118 = scmp.lt.s32.totalorder %s15, 3
      %p119 = pnand %p117, %p118
      %p120 = pneg %p119
      // Predicated region
      $region9: #{tpu_custom_call.1} parent=5 // pred_check
        _
      $region10: #{tpu_custom_call.1} parent=5 // pred_check_branch
        %122 = sbr.rel (%p119) target = $region12
      $region11: #{tpu_custom_call.1} parent=5 // pred_region
        %s123 = ssub.s32 %s15, 1
        // Predicated region
        $region13: #{tpu_custom_call.1} parent=11 // pred_check
          %p124 = pneg %p62
        $region14: #{tpu_custom_call.1} parent=11 // pred_check_branch
          %126 = sbr.rel (%p124) target = $region16
        $region15: #{tpu_custom_call.1} parent=11 // pred_region
          _
        $region16: #{tpu_custom_call.1} parent=11 // pred_fallthru
          _
        // Predicated region
        $region17: #{tpu_custom_call.1} parent=11 // pred_check
          %p127 = pneg %p83
        $region18: #{tpu_custom_call.1} parent=11 // pred_check_branch
          %129 = sbr.rel (%p127) target = $region20
        $region19: #{tpu_custom_call.1} parent=11 // pred_region
          _
        $region20: #{tpu_custom_call.1} parent=11 // pred_fallthru
          _
      $region12: #{tpu_custom_call.1} parent=5 // pred_fallthru
        _
      %p130 = scmp.lt.s32.totalorder %s15, 2
      // Predicated region
      $region21: #{tpu_custom_call.1} parent=5 // pred_check
        %p131 = pneg %p130
      $region22: #{tpu_custom_call.1} parent=5 // pred_check_branch
        %133 = sbr.rel (%p131) target = $region24
      $region23: #{tpu_custom_call.1} parent=5 // pred_region
        // Predicated region
        $region25: #{tpu_custom_call.1} parent=23 // pred_check
          %p134 = pneg %p35
        $region26: #{tpu_custom_call.1} parent=23 // pred_check_branch
          %136 = sbr.rel (%p134) target = $region28
        $region27: #{tpu_custom_call.1} parent=23 // pred_region
          %s137 = sand.u32 %s25, 1
          %s138 = scalar_lea.sflag [#allocation4], %s137
          %s139 = sand.u32 %s25, 1
          %s140 = smul.addr %s139, 8
          %s141 = scalar_lea.vmem [#allocation3], %s140
          %143 = vsyncadd %s138, 0
          %s144 = smul.addr %s15, 2
          %s145 = smul.addr %s144, 4
          %s146 = scalar_lea.hbm %s0, %s145
          %s148 = sshll.u32 %s146, 4
          %s149 = int_to_ptr.hbm [resolvable:$true] %s148
          %s150 = sshll.u32 %s141, 4
          %s151 = int_to_ptr.vmem [resolvable:$true] %s150
          %153 = dma.hbm_to_vmem [thread:$0]  %s149, 128, %s151, %s138
        $region28: #{tpu_custom_call.1} parent=23 // pred_fallthru
          _
      $region24: #{tpu_custom_call.1} parent=5 // pred_fallthru
        _
      %p154 = scmp.le.s32.totalorder 1, %s15
      %p155 = scmp.lt.s32.totalorder %s15, 3
      %p156 = pnand %p154, %p155
      %p157 = pneg %p156
      // Predicated region
      $region29: #{tpu_custom_call.1} parent=5 // pred_check
        _
      $region30: #{tpu_custom_call.1} parent=5 // pred_check_branch
        %159 = sbr.rel (%p156) target = $region32
      $region31: #{tpu_custom_call.1} parent=5 // pred_region
        %s160 = ssub.s32 %s15, 1
        %s161 = sand.u32 %s28, 1
        %s162 = scalar_lea.sflag [#allocation4], %s161
        %s163 = sand.u32 %s28, 1
        %s164 = smul.addr %s163, 8
        %s165 = scalar_lea.vmem [#allocation3], %s164
        // Predicated region
        $region33: #{tpu_custom_call.1} parent=31 // pred_check
          %p166 = pneg %p41
        $region34: #{tpu_custom_call.1} parent=31 // pred_check_branch
          %168 = sbr.rel (%p166) target = $region36
        $region35: #{tpu_custom_call.1} parent=31 // pred_region
          %170 = dma.done %s162, 128
        $region36: #{tpu_custom_call.1} parent=31 // pred_fallthru
          _
        %s171 = sand.u32 %s28, 1
        %s172 = scalar_lea.sflag [#allocation4], %s171
        %s173 = sand.u32 %s28, 1
        %s174 = smul.addr %s173, 8
        %s175 = scalar_lea.vmem [#allocation3], %s174
        %p176 = pneg %p41
        %p177 = pneg %p38
        %p178 = pneg %p62
        %p179 = pneg %p59
        %p180 = pneg %p83
        %p181 = pneg %p80
        %p182 = pneg %p109
        %p183 = pneg %p106
        %s184 = sand.u32 %s96, 1
        %s185 = scalar_lea.sflag [#allocation5], %s184
        %s186 = sand.u32 %s96, 1
        %s187 = smul.addr %s186, 4
        %s188 = scalar_lea.vmem [#allocation6], %s187
        %v189 = vld [vmem:[%s165] sm:$0xff]
        %190 = vst [vmem:[#allocation2] sm:$0xf] 0.0
        %192 = vst [vmem:[#allocation1] ss:$2 sm:$0xff] %v189
        %v193 = vld.sshfl [vmem:[#allocation1] sm:$0xff pattern:$0x75316420]
        %v194 = vld.sshfl [vmem:[#allocation1 + $0x8] sm:$0xff pattern:$0x75316420]
        %197 = vrot.lane.b32.xlu0 %v193, 17
        %v198 = vpop.permute.xlu0 %197
        %199 = vrot.lane.b32.xlu0 %v194, 17
        %v200 = vpop.permute.xlu0 %199
        %v201 = vlaneseq
        %v202 = vand.u32 %v201, 127
        %vm203 = vcmp.lt.s32.totalorder %v202, 17
        %v204 = vsel %vm203, %v198, %v200
        %v205 = vsel %vm203, %v200, %v198
        %v206 = vld [vmem:[%s1] sm:$0x3]
        %vm207 = vcmask 31744
        %v209 = vsel %vm207, %v206, 0
        %vm211 = vcmask 1043456
        %v213 = vsel %vm211, %v205, 0
        %v216 = vsel %vm211, %v204, 0
        %218 = vmatpush.msra.mxu0 0.0
        %219 = vmatpush.msra.mxu0 0.0
        %220 = vmatpush.msra.mxu0 0.0
        %221 = vmatpush.msra.mxu0 0.0
        %222 = vmatpush.msra.mxu0 0.0
        %223 = vmatpush.msra.mxu0 0.0
        %224 = vmatpush.msra.mxu0 0.0
        %225 = vmatpush.msra.mxu0 0.0
        %226 = vmatpush.msra.mxu0 0.0
        %227 = vmatpush.msra.mxu0 0.0
        %228 = vmatpush.msra.mxu0 0.0
        %229 = vmatpush.msra.mxu0 0.0
        %230 = vmatpush.msra.mxu0 0.0
        %231 = vmatpush.msra.mxu0 0.0
        %232 = vmatpush.msra.mxu0 0.0
        %233 = vmatpush.msra.mxu0 %v213
        %234 = vmatmul.f32.gmra.mxu0 %v209
        %v235 = vpop.f32.mrf.mxu0
        %v236 = vadd.f32 0.0, %v235
        %237 = vdwg.mxu0
        %238 = vmatpush.msra.mxu0 0.0
        %239 = vmatpush.msra.mxu0 0.0
        %240 = vmatpush.msra.mxu0 0.0
        %241 = vmatpush.msra.mxu0 0.0
        %242 = vmatpush.msra.mxu0 0.0
        %243 = vmatpush.msra.mxu0 0.0
        %244 = vmatpush.msra.mxu0 0.0
        %245 = vmatpush.msra.mxu0 0.0
        %246 = vmatpush.msra.mxu0 0.0
        %247 = vmatpush.msra.mxu0 0.0
        %248 = vmatpush.msra.mxu0 0.0
        %249 = vmatpush.msra.mxu0 0.0
        %250 = vmatpush.msra.mxu0 0.0
        %251 = vmatpush.msra.mxu0 0.0
        %252 = vmatpush.msra.mxu0 0.0
        %253 = vmatpush.msra.mxu0 %v216
        %254 = vmatmul.f32.gmra.mxu0 %v209
        %v255 = vpop.f32.mrf.mxu0
        %v256 = vadd.f32 0.0, %v255
        %257 = vdwg.mxu0
        %v258 = vld [vmem:[%s2] sm:$0x3]
        %v260 = vperm.slane %v258, 0
        %v261 = vperm.slane %v258, 1
        %v264 = vmul.f32 %v236, %v260
        %v265 = vmul.f32 %v256, %v261
        %v266 = vld [vmem:[#allocation2] sm:$0xf]
        %v269 = vrot.slane %v265, 6
        %vm270 = vcmask 1041408
        %v271 = vsel %vm270, %v264, %v269
        %v273 = vadd.f32 %v266, %v271
        %274 = vst [vmem:[#allocation2] sm:$0xf] %v273
        %275 = vst [vmem:[#allocation1] ss:$2 sm:$0xff] %v189
        %v276 = vld.sshfl [vmem:[#allocation1] sm:$0xff pattern:$0x75316420]
        %v277 = vld.sshfl [vmem:[#allocation1 + $0x8] sm:$0xff pattern:$0x75316420]
        %280 = vrot.lane.b32.xlu0 %v276, 16
        %v281 = vpop.permute.xlu0 %280
        %282 = vrot.lane.b32.xlu0 %v277, 16
        %v283 = vpop.permute.xlu0 %282
        %vm284 = vcmp.lt.s32.totalorder %v202, 16
        %v285 = vsel %vm284, %v281, %v283
        %v286 = vsel %vm284, %v283, %v281
        %s287 = scalar_lea.vmem %s1, 2
        %v288 = vld [vmem:[%s287] sm:$0x3]
        %v290 = vsel %vm207, %v288, 0
        %v293 = vsel %vm211, %v286, 0
        %v296 = vsel %vm211, %v285, 0
        %298 = vmatpush.msra.mxu0 0.0
        %299 = vmatpush.msra.mxu0 0.0
        %300 = vmatpush.msra.mxu0 0.0
        %301 = vmatpush.msra.mxu0 0.0
        %302 = vmatpush.msra.mxu0 0.0
        %303 = vmatpush.msra.mxu0 0.0
        %304 = vmatpush.msra.mxu0 0.0
        %305 = vmatpush.msra.mxu0 0.0
        %306 = vmatpush.msra.mxu0 0.0
        %307 = vmatpush.msra.mxu0 0.0
        %308 = vmatpush.msra.mxu0 0.0
        %309 = vmatpush.msra.mxu0 0.0
        %310 = vmatpush.msra.mxu0 0.0
        %311 = vmatpush.msra.mxu0 0.0
        %312 = vmatpush.msra.mxu0 0.0
        %313 = vmatpush.msra.mxu0 %v293
        %314 = vmatmul.f32.gmra.mxu0 %v290
        %v315 = vpop.f32.mrf.mxu0
        %v316 = vadd.f32 0.0, %v315
        %317 = vdwg.mxu0
        %318 = vmatpush.msra.mxu0 0.0
        %319 = vmatpush.msra.mxu0 0.0
        %320 = vmatpush.msra.mxu0 0.0
        %321 = vmatpush.msra.mxu0 0.0
        %322 = vmatpush.msra.mxu0 0.0
        %323 = vmatpush.msra.mxu0 0.0
        %324 = vmatpush.msra.mxu0 0.0
        %325 = vmatpush.msra.mxu0 0.0
        %326 = vmatpush.msra.mxu0 0.0
        %327 = vmatpush.msra.mxu0 0.0
        %328 = vmatpush.msra.mxu0 0.0
        %329 = vmatpush.msra.mxu0 0.0
        %330 = vmatpush.msra.mxu0 0.0
        %331 = vmatpush.msra.mxu0 0.0
        %332 = vmatpush.msra.mxu0 0.0
        %333 = vmatpush.msra.mxu0 %v296
        %334 = vmatmul.f32.gmra.mxu0 %v290
        %v335 = vpop.f32.mrf.mxu0
        %v336 = vadd.f32 0.0, %v335
        %337 = vdwg.mxu0
        %s338 = scalar_lea.vmem %s2, 2
        %v339 = vld [vmem:[%s338] sm:$0x3]
        %v341 = vperm.slane %v339, 0
        %v342 = vperm.slane %v339, 1
        %v345 = vmul.f32 %v316, %v341
        %v346 = vmul.f32 %v336, %v342
        %v347 = vld [vmem:[#allocation2] sm:$0xf]
        %v350 = vrot.slane %v346, 6
        %v351 = vsel %vm270, %v345, %v350
        %v353 = vadd.f32 %v347, %v351
        %354 = vst [vmem:[#allocation2] sm:$0xf] %v353
        %355 = vst [vmem:[#allocation1] ss:$2 sm:$0xff] %v189
        %v356 = vld.sshfl [vmem:[#allocation1] sm:$0xff pattern:$0x75316420]
        %v357 = vld.sshfl [vmem:[#allocation1 + $0x8] sm:$0xff pattern:$0x75316420]
        %360 = vrot.lane.b32.xlu0 %v356, 15
        %v361 = vpop.permute.xlu0 %360
        %362 = vrot.lane.b32.xlu0 %v357, 15
        %v363 = vpop.permute.xlu0 %362
        %vm364 = vcmp.lt.s32.totalorder %v202, 15
        %v365 = vsel %vm364, %v361, %v363
        %v366 = vsel %vm364, %v363, %v361
        %s367 = scalar_lea.vmem %s1, 4
        %v368 = vld [vmem:[%s367] sm:$0x3]
        %v370 = vsel %vm207, %v368, 0
        %v373 = vsel %vm211, %v366, 0
        %v376 = vsel %vm211, %v365, 0
        %378 = vmatpush.msra.mxu0 0.0
        %379 = vmatpush.msra.mxu0 0.0
        %380 = vmatpush.msra.mxu0 0.0
        %381 = vmatpush.msra.mxu0 0.0
        %382 = vmatpush.msra.mxu0 0.0
        %383 = vmatpush.msra.mxu0 0.0
        %384 = vmatpush.msra.mxu0 0.0
        %385 = vmatpush.msra.mxu0 0.0
        %386 = vmatpush.msra.mxu0 0.0
        %387 = vmatpush.msra.mxu0 0.0
        %388 = vmatpush.msra.mxu0 0.0
        %389 = vmatpush.msra.mxu0 0.0
        %390 = vmatpush.msra.mxu0 0.0
        %391 = vmatpush.msra.mxu0 0.0
        %392 = vmatpush.msra.mxu0 0.0
        %393 = vmatpush.msra.mxu0 %v373
        %394 = vmatmul.f32.gmra.mxu0 %v370
        %v395 = vpop.f32.mrf.mxu0
        %v396 = vadd.f32 0.0, %v395
        %397 = vdwg.mxu0
        %398 = vmatpush.msra.mxu0 0.0
        %399 = vmatpush.msra.mxu0 0.0
        %400 = vmatpush.msra.mxu0 0.0
        %401 = vmatpush.msra.mxu0 0.0
        %402 = vmatpush.msra.mxu0 0.0
        %403 = vmatpush.msra.mxu0 0.0
        %404 = vmatpush.msra.mxu0 0.0
        %405 = vmatpush.msra.mxu0 0.0
        %406 = vmatpush.msra.mxu0 0.0
        %407 = vmatpush.msra.mxu0 0.0
        %408 = vmatpush.msra.mxu0 0.0
        %409 = vmatpush.msra.mxu0 0.0
        %410 = vmatpush.msra.mxu0 0.0
        %411 = vmatpush.msra.mxu0 0.0
        %412 = vmatpush.msra.mxu0 0.0
        %413 = vmatpush.msra.mxu0 %v376
        %414 = vmatmul.f32.gmra.mxu0 %v370
        %v415 = vpop.f32.mrf.mxu0
        %v416 = vadd.f32 0.0, %v415
        %417 = vdwg.mxu0
        %s418 = scalar_lea.vmem %s2, 4
        %v419 = vld [vmem:[%s418] sm:$0x3]
        %v421 = vperm.slane %v419, 0
        %v422 = vperm.slane %v419, 1
        %v425 = vmul.f32 %v396, %v421
        %v426 = vmul.f32 %v416, %v422
        %v427 = vld [vmem:[#allocation2] sm:$0xf]
        %v430 = vrot.slane %v426, 6
        %v431 = vsel %vm270, %v425, %v430
        %v433 = vadd.f32 %v427, %v431
        %434 = vst [vmem:[#allocation2] sm:$0xf] %v433
        %435 = vst [vmem:[#allocation1] ss:$2 sm:$0xff] %v189
        %v436 = vld.sshfl [vmem:[#allocation1] sm:$0xff pattern:$0x75316420]
        %v437 = vld.sshfl [vmem:[#allocation1 + $0x8] sm:$0xff pattern:$0x75316420]
        %440 = vrot.lane.b32.xlu0 %v436, 1
        %v441 = vpop.permute.xlu0 %440
        %442 = vrot.lane.b32.xlu0 %v437, 1
        %v443 = vpop.permute.xlu0 %442
        %vm444 = vcmp.lt.s32.totalorder %v202, 1
        %v445 = vsel %vm444, %v441, %v443
        %v446 = vsel %vm444, %v443, %v441
        %s447 = scalar_lea.vmem %s1, 6
        %v448 = vld [vmem:[%s447] sm:$0x3]
        %v450 = vsel %vm207, %v448, 0
        %v453 = vsel %vm211, %v446, 0
        %v456 = vsel %vm211, %v445, 0
        %458 = vmatpush.msra.mxu0 0.0
        %459 = vmatpush.msra.mxu0 0.0
        %460 = vmatpush.msra.mxu0 0.0
        %461 = vmatpush.msra.mxu0 0.0
        %462 = vmatpush.msra.mxu0 0.0
        %463 = vmatpush.msra.mxu0 0.0
        %464 = vmatpush.msra.mxu0 0.0
        %465 = vmatpush.msra.mxu0 0.0
        %466 = vmatpush.msra.mxu0 0.0
        %467 = vmatpush.msra.mxu0 0.0
        %468 = vmatpush.msra.mxu0 0.0
        %469 = vmatpush.msra.mxu0 0.0
        %470 = vmatpush.msra.mxu0 0.0
        %471 = vmatpush.msra.mxu0 0.0
        %472 = vmatpush.msra.mxu0 0.0
        %473 = vmatpush.msra.mxu0 %v453
        %474 = vmatmul.f32.gmra.mxu0 %v450
        %v475 = vpop.f32.mrf.mxu0
        %v476 = vadd.f32 0.0, %v475
        %477 = vdwg.mxu0
        %478 = vmatpush.msra.mxu0 0.0
        %479 = vmatpush.msra.mxu0 0.0
        %480 = vmatpush.msra.mxu0 0.0
        %481 = vmatpush.msra.mxu0 0.0
        %482 = vmatpush.msra.mxu0 0.0
        %483 = vmatpush.msra.mxu0 0.0
        %484 = vmatpush.msra.mxu0 0.0
        %485 = vmatpush.msra.mxu0 0.0
        %486 = vmatpush.msra.mxu0 0.0
        %487 = vmatpush.msra.mxu0 0.0
        %488 = vmatpush.msra.mxu0 0.0
        %489 = vmatpush.msra.mxu0 0.0
        %490 = vmatpush.msra.mxu0 0.0
        %491 = vmatpush.msra.mxu0 0.0
        %492 = vmatpush.msra.mxu0 0.0
        %493 = vmatpush.msra.mxu0 %v456
        %494 = vmatmul.f32.gmra.mxu0 %v450
        %v495 = vpop.f32.mrf.mxu0
        %v496 = vadd.f32 0.0, %v495
        %497 = vdwg.mxu0
        %s498 = scalar_lea.vmem %s2, 6
        %v499 = vld [vmem:[%s498] sm:$0x3]
        %v501 = vperm.slane %v499, 0
        %v502 = vperm.slane %v499, 1
        %v505 = vmul.f32 %v476, %v501
        %v506 = vmul.f32 %v496, %v502
        %v507 = vld [vmem:[#allocation2] sm:$0xf]
        %v510 = vrot.slane %v506, 6
        %v511 = vsel %vm270, %v505, %v510
        %v513 = vadd.f32 %v507, %v511
        %514 = vst [vmem:[#allocation2] sm:$0xf] %v513
        %s515 = scalar_lea.vmem %s1, 8
        %v516 = vld [vmem:[%s515] sm:$0x3]
        %517 = vst [vmem:[#allocation1] ss:$2 sm:$0xff] %v189
        %v518 = vld.sshfl [vmem:[#allocation1] sm:$0xff pattern:$0x75316420]
        %v519 = vld.sshfl [vmem:[#allocation1 + $0x8] sm:$0xff pattern:$0x75316420]
        %v521 = vsel %vm207, %v516, 0
        %v523 = vsel %vm211, %v518, 0
        %v525 = vsel %vm211, %v519, 0
        %527 = vmatpush.msra.mxu0 0.0
        %528 = vmatpush.msra.mxu0 0.0
        %529 = vmatpush.msra.mxu0 0.0
        %530 = vmatpush.msra.mxu0 0.0
        %531 = vmatpush.msra.mxu0 0.0
        %532 = vmatpush.msra.mxu0 0.0
        %533 = vmatpush.msra.mxu0 0.0
        %534 = vmatpush.msra.mxu0 0.0
        %535 = vmatpush.msra.mxu0 0.0
        %536 = vmatpush.msra.mxu0 0.0
        %537 = vmatpush.msra.mxu0 0.0
        %538 = vmatpush.msra.mxu0 0.0
        %539 = vmatpush.msra.mxu0 0.0
        %540 = vmatpush.msra.mxu0 0.0
        %541 = vmatpush.msra.mxu0 0.0
        %542 = vmatpush.msra.mxu0 %v523
        %543 = vmatmul.f32.gmra.mxu0 %v521
        %v544 = vpop.f32.mrf.mxu0
        %v545 = vadd.f32 0.0, %v544
        %546 = vdwg.mxu0
        %547 = vmatpush.msra.mxu0 0.0
        %548 = vmatpush.msra.mxu0 0.0
        %549 = vmatpush.msra.mxu0 0.0
        %550 = vmatpush.msra.mxu0 0.0
        %551 = vmatpush.msra.mxu0 0.0
        %552 = vmatpush.msra.mxu0 0.0
        %553 = vmatpush.msra.mxu0 0.0
        %554 = vmatpush.msra.mxu0 0.0
        %555 = vmatpush.msra.mxu0 0.0
        %556 = vmatpush.msra.mxu0 0.0
        %557 = vmatpush.msra.mxu0 0.0
        %558 = vmatpush.msra.mxu0 0.0
        %559 = vmatpush.msra.mxu0 0.0
        %560 = vmatpush.msra.mxu0 0.0
        %561 = vmatpush.msra.mxu0 0.0
        %562 = vmatpush.msra.mxu0 %v525
        %563 = vmatmul.f32.gmra.mxu0 %v521
        %v564 = vpop.f32.mrf.mxu0
        %v565 = vadd.f32 0.0, %v564
        %566 = vdwg.mxu0
        %v567 = vld [vmem:[#allocation2] sm:$0xf]
        %v570 = vrot.slane %v565, 6
        %v571 = vsel %vm270, %v545, %v570
        %v573 = vadd.f32 %v567, %v571
        %574 = vst [vmem:[#allocation2] sm:$0xf] %v573
        %575 = vst [vmem:[#allocation1] ss:$2 sm:$0xff] %v189
        %v576 = vld.sshfl [vmem:[#allocation1] sm:$0xff pattern:$0x75316420]
        %v577 = vld.sshfl [vmem:[#allocation1 + $0x8] sm:$0xff pattern:$0x75316420]
        %580 = vrot.lane.b32.xlu0 %v576, 127
        %v581 = vpop.permute.xlu0 %580
        %582 = vrot.lane.b32.xlu0 %v577, 127
        %v583 = vpop.permute.xlu0 %582
        %vm584 = vcmp.lt.s32.totalorder %v202, 127
        %v585 = vsel %vm584, %v581, %v583
        %v586 = vsel %vm584, %v583, %v581
        %s587 = scalar_lea.vmem %s1, 10
        %v588 = vld [vmem:[%s587] sm:$0x3]
        %v590 = vsel %vm207, %v588, 0
        %v593 = vsel %vm211, %v585, 0
        %v596 = vsel %vm211, %v586, 0
        %598 = vmatpush.msra.mxu0 0.0
        %599 = vmatpush.msra.mxu0 0.0
        %600 = vmatpush.msra.mxu0 0.0
        %601 = vmatpush.msra.mxu0 0.0
        %602 = vmatpush.msra.mxu0 0.0
        %603 = vmatpush.msra.mxu0 0.0
        %604 = vmatpush.msra.mxu0 0.0
        %605 = vmatpush.msra.mxu0 0.0
        %606 = vmatpush.msra.mxu0 0.0
        %607 = vmatpush.msra.mxu0 0.0
        %608 = vmatpush.msra.mxu0 0.0
        %609 = vmatpush.msra.mxu0 0.0
        %610 = vmatpush.msra.mxu0 0.0
        %611 = vmatpush.msra.mxu0 0.0
        %612 = vmatpush.msra.mxu0 0.0
        %613 = vmatpush.msra.mxu0 %v593
        %614 = vmatmul.f32.gmra.mxu0 %v590
        %v615 = vpop.f32.mrf.mxu0
        %v616 = vadd.f32 0.0, %v615
        %617 = vdwg.mxu0
        %618 = vmatpush.msra.mxu0 0.0
        %619 = vmatpush.msra.mxu0 0.0
        %620 = vmatpush.msra.mxu0 0.0
        %621 = vmatpush.msra.mxu0 0.0
        %622 = vmatpush.msra.mxu0 0.0
        %623 = vmatpush.msra.mxu0 0.0
        %624 = vmatpush.msra.mxu0 0.0
        %625 = vmatpush.msra.mxu0 0.0
        %626 = vmatpush.msra.mxu0 0.0
        %627 = vmatpush.msra.mxu0 0.0
        %628 = vmatpush.msra.mxu0 0.0
        %629 = vmatpush.msra.mxu0 0.0
        %630 = vmatpush.msra.mxu0 0.0
        %631 = vmatpush.msra.mxu0 0.0
        %632 = vmatpush.msra.mxu0 0.0
        %633 = vmatpush.msra.mxu0 %v596
        %634 = vmatmul.f32.gmra.mxu0 %v590
        %v635 = vpop.f32.mrf.mxu0
        %v636 = vadd.f32 0.0, %v635
        %637 = vdwg.mxu0
        %s638 = scalar_lea.vmem %s2, 10
        %v639 = vld [vmem:[%s638] sm:$0x3]
        %v641 = vperm.slane %v639, 0
        %v642 = vperm.slane %v639, 1
        %v645 = vmul.f32 %v616, %v641
        %v646 = vmul.f32 %v636, %v642
        %v647 = vld [vmem:[#allocation2] sm:$0xf]
        %v650 = vrot.slane %v646, 6
        %v651 = vsel %vm270, %v645, %v650
        %v653 = vadd.f32 %v647, %v651
        %654 = vst [vmem:[#allocation2] sm:$0xf] %v653
        %655 = vst [vmem:[#allocation1] ss:$2 sm:$0xff] %v189
        %v656 = vld.sshfl [vmem:[#allocation1] sm:$0xff pattern:$0x75316420]
        %v657 = vld.sshfl [vmem:[#allocation1 + $0x8] sm:$0xff pattern:$0x75316420]
        %660 = vrot.lane.b32.xlu0 %v656, 113
        %v661 = vpop.permute.xlu0 %660
        %662 = vrot.lane.b32.xlu0 %v657, 113
        %v663 = vpop.permute.xlu0 %662
        %vm664 = vcmp.lt.s32.totalorder %v202, 113
        %v665 = vsel %vm664, %v661, %v663
        %v666 = vsel %vm664, %v663, %v661
        %s667 = scalar_lea.vmem %s1, 12
        %v668 = vld [vmem:[%s667] sm:$0x3]
        %v670 = vsel %vm207, %v668, 0
        %v673 = vsel %vm211, %v665, 0
        %v676 = vsel %vm211, %v666, 0
        %678 = vmatpush.msra.mxu0 0.0
        %679 = vmatpush.msra.mxu0 0.0
        %680 = vmatpush.msra.mxu0 0.0
        %681 = vmatpush.msra.mxu0 0.0
        %682 = vmatpush.msra.mxu0 0.0
        %683 = vmatpush.msra.mxu0 0.0
        %684 = vmatpush.msra.mxu0 0.0
        %685 = vmatpush.msra.mxu0 0.0
        %686 = vmatpush.msra.mxu0 0.0
        %687 = vmatpush.msra.mxu0 0.0
        %688 = vmatpush.msra.mxu0 0.0
        %689 = vmatpush.msra.mxu0 0.0
        %690 = vmatpush.msra.mxu0 0.0
        %691 = vmatpush.msra.mxu0 0.0
        %692 = vmatpush.msra.mxu0 0.0
        %693 = vmatpush.msra.mxu0 %v673
        %694 = vmatmul.f32.gmra.mxu0 %v670
        %v695 = vpop.f32.mrf.mxu0
        %v696 = vadd.f32 0.0, %v695
        %697 = vdwg.mxu0
        %698 = vmatpush.msra.mxu0 0.0
        %699 = vmatpush.msra.mxu0 0.0
        %700 = vmatpush.msra.mxu0 0.0
        %701 = vmatpush.msra.mxu0 0.0
        %702 = vmatpush.msra.mxu0 0.0
        %703 = vmatpush.msra.mxu0 0.0
        %704 = vmatpush.msra.mxu0 0.0
        %705 = vmatpush.msra.mxu0 0.0
        %706 = vmatpush.msra.mxu0 0.0
        %707 = vmatpush.msra.mxu0 0.0
        %708 = vmatpush.msra.mxu0 0.0
        %709 = vmatpush.msra.mxu0 0.0
        %710 = vmatpush.msra.mxu0 0.0
        %711 = vmatpush.msra.mxu0 0.0
        %712 = vmatpush.msra.mxu0 0.0
        %713 = vmatpush.msra.mxu0 %v676
        %714 = vmatmul.f32.gmra.mxu0 %v670
        %v715 = vpop.f32.mrf.mxu0
        %v716 = vadd.f32 0.0, %v715
        %717 = vdwg.mxu0
        %s718 = scalar_lea.vmem %s2, 12
        %v719 = vld [vmem:[%s718] sm:$0x3]
        %v721 = vperm.slane %v719, 0
        %v722 = vperm.slane %v719, 1
        %v725 = vmul.f32 %v696, %v721
        %v726 = vmul.f32 %v716, %v722
        %v727 = vld [vmem:[#allocation2] sm:$0xf]
        %v730 = vrot.slane %v726, 6
        %v731 = vsel %vm270, %v725, %v730
        %v733 = vadd.f32 %v727, %v731
        %734 = vst [vmem:[#allocation2] sm:$0xf] %v733
        %735 = vst [vmem:[#allocation1] ss:$2 sm:$0xff] %v189
        %v736 = vld.sshfl [vmem:[#allocation1] sm:$0xff pattern:$0x75316420]
        %v737 = vld.sshfl [vmem:[#allocation1 + $0x8] sm:$0xff pattern:$0x75316420]
        %740 = vrot.lane.b32.xlu0 %v736, 112
        %v741 = vpop.permute.xlu0 %740
        %742 = vrot.lane.b32.xlu0 %v737, 112
        %v743 = vpop.permute.xlu0 %742
        %vm744 = vcmp.lt.s32.totalorder %v202, 112
        %v745 = vsel %vm744, %v741, %v743
        %v746 = vsel %vm744, %v743, %v741
        %s747 = scalar_lea.vmem %s1, 14
        %v748 = vld [vmem:[%s747] sm:$0x3]
        %v750 = vsel %vm207, %v748, 0
        %v753 = vsel %vm211, %v745, 0
        %v756 = vsel %vm211, %v746, 0
        %758 = vmatpush.msra.mxu0 0.0
        %759 = vmatpush.msra.mxu0 0.0
        %760 = vmatpush.msra.mxu0 0.0
        %761 = vmatpush.msra.mxu0 0.0
        %762 = vmatpush.msra.mxu0 0.0
        %763 = vmatpush.msra.mxu0 0.0
        %764 = vmatpush.msra.mxu0 0.0
        %765 = vmatpush.msra.mxu0 0.0
        %766 = vmatpush.msra.mxu0 0.0
        %767 = vmatpush.msra.mxu0 0.0
        %768 = vmatpush.msra.mxu0 0.0
        %769 = vmatpush.msra.mxu0 0.0
        %770 = vmatpush.msra.mxu0 0.0
        %771 = vmatpush.msra.mxu0 0.0
        %772 = vmatpush.msra.mxu0 0.0
        %773 = vmatpush.msra.mxu0 %v753
        %774 = vmatmul.f32.gmra.mxu0 %v750
        %v775 = vpop.f32.mrf.mxu0
        %v776 = vadd.f32 0.0, %v775
        %777 = vdwg.mxu0
        %778 = vmatpush.msra.mxu0 0.0
        %779 = vmatpush.msra.mxu0 0.0
        %780 = vmatpush.msra.mxu0 0.0
        %781 = vmatpush.msra.mxu0 0.0
        %782 = vmatpush.msra.mxu0 0.0
        %783 = vmatpush.msra.mxu0 0.0
        %784 = vmatpush.msra.mxu0 0.0
        %785 = vmatpush.msra.mxu0 0.0
        %786 = vmatpush.msra.mxu0 0.0
        %787 = vmatpush.msra.mxu0 0.0
        %788 = vmatpush.msra.mxu0 0.0
        %789 = vmatpush.msra.mxu0 0.0
        %790 = vmatpush.msra.mxu0 0.0
        %791 = vmatpush.msra.mxu0 0.0
        %792 = vmatpush.msra.mxu0 0.0
        %793 = vmatpush.msra.mxu0 %v756
        %794 = vmatmul.f32.gmra.mxu0 %v750
        %v795 = vpop.f32.mrf.mxu0
        %v796 = vadd.f32 0.0, %v795
        %797 = vdwg.mxu0
        %s798 = scalar_lea.vmem %s2, 14
        %v799 = vld [vmem:[%s798] sm:$0x3]
        %v801 = vperm.slane %v799, 0
        %v802 = vperm.slane %v799, 1
        %v805 = vmul.f32 %v776, %v801
        %v806 = vmul.f32 %v796, %v802
        %v807 = vld [vmem:[#allocation2] sm:$0xf]
        %v810 = vrot.slane %v806, 6
        %v811 = vsel %vm270, %v805, %v810
        %v813 = vadd.f32 %v807, %v811
        %814 = vst [vmem:[#allocation2] sm:$0xf] %v813
        %815 = vst [vmem:[#allocation1] ss:$2 sm:$0xff] %v189
        %v816 = vld.sshfl [vmem:[#allocation1] sm:$0xff pattern:$0x75316420]
        %v817 = vld.sshfl [vmem:[#allocation1 + $0x8] sm:$0xff pattern:$0x75316420]
        %820 = vrot.lane.b32.xlu0 %v816, 111
        %v821 = vpop.permute.xlu0 %820
        %822 = vrot.lane.b32.xlu0 %v817, 111
        %v823 = vpop.permute.xlu0 %822
        %vm824 = vcmp.lt.s32.totalorder %v202, 111
        %v825 = vsel %vm824, %v821, %v823
        %v826 = vsel %vm824, %v823, %v821
        %s827 = scalar_lea.vmem %s1, 16
        %v828 = vld [vmem:[%s827] sm:$0x3]
        %v830 = vsel %vm207, %v828, 0
        %v833 = vsel %vm211, %v825, 0
        %v836 = vsel %vm211, %v826, 0
        %838 = vmatpush.msra.mxu0 0.0
        %839 = vmatpush.msra.mxu0 0.0
        %840 = vmatpush.msra.mxu0 0.0
        %841 = vmatpush.msra.mxu0 0.0
        %842 = vmatpush.msra.mxu0 0.0
        %843 = vmatpush.msra.mxu0 0.0
        %844 = vmatpush.msra.mxu0 0.0
        %845 = vmatpush.msra.mxu0 0.0
        %846 = vmatpush.msra.mxu0 0.0
        %847 = vmatpush.msra.mxu0 0.0
        %848 = vmatpush.msra.mxu0 0.0
        %849 = vmatpush.msra.mxu0 0.0
        %850 = vmatpush.msra.mxu0 0.0
        %851 = vmatpush.msra.mxu0 0.0
        %852 = vmatpush.msra.mxu0 0.0
        %853 = vmatpush.msra.mxu0 %v833
        %854 = vmatmul.f32.gmra.mxu0 %v830
        %v855 = vpop.f32.mrf.mxu0
        %v856 = vadd.f32 0.0, %v855
        %857 = vdwg.mxu0
        %858 = vmatpush.msra.mxu0 0.0
        %859 = vmatpush.msra.mxu0 0.0
        %860 = vmatpush.msra.mxu0 0.0
        %861 = vmatpush.msra.mxu0 0.0
        %862 = vmatpush.msra.mxu0 0.0
        %863 = vmatpush.msra.mxu0 0.0
        %864 = vmatpush.msra.mxu0 0.0
        %865 = vmatpush.msra.mxu0 0.0
        %866 = vmatpush.msra.mxu0 0.0
        %867 = vmatpush.msra.mxu0 0.0
        %868 = vmatpush.msra.mxu0 0.0
        %869 = vmatpush.msra.mxu0 0.0
        %870 = vmatpush.msra.mxu0 0.0
        %871 = vmatpush.msra.mxu0 0.0
        %872 = vmatpush.msra.mxu0 0.0
        %873 = vmatpush.msra.mxu0 %v836
        %874 = vmatmul.f32.gmra.mxu0 %v830
        %v875 = vpop.f32.mrf.mxu0
        %v876 = vadd.f32 0.0, %v875
        %877 = vdwg.mxu0
        %s878 = scalar_lea.vmem %s2, 16
        %v879 = vld [vmem:[%s878] sm:$0x3]
        %v881 = vperm.slane %v879, 0
        %v882 = vperm.slane %v879, 1
        %v885 = vmul.f32 %v856, %v881
        %v886 = vmul.f32 %v876, %v882
        %v887 = vld [vmem:[#allocation2] sm:$0xf]
        %v890 = vrot.slane %v886, 6
        %v891 = vsel %vm270, %v885, %v890
        %v893 = vadd.f32 %v887, %v891
        %894 = vst [vmem:[#allocation2] sm:$0xf] %v893
        %v895 = vld [vmem:[#allocation2] sm:$0xf]
        %896 = vst [vmem:[%s188] sm:$0xf] %v895
        %s897 = sand.u32 %s96, 1
        %s898 = scalar_lea.sflag [#allocation5], %s897
        %s899 = sand.u32 %s96, 1
        %s900 = smul.addr %s899, 4
        %s901 = scalar_lea.vmem [#allocation6], %s900
        // Predicated region
        $region37: #{tpu_custom_call.1} parent=31 // pred_check
          %p902 = pneg %p106
        $region38: #{tpu_custom_call.1} parent=31 // pred_check_branch
          %904 = sbr.rel (%p902) target = $region40
        $region39: #{tpu_custom_call.1} parent=31 // pred_region
          %906 = vsyncadd %s898, 0
          %s907 = smul.addr %s20, 2
          %s908 = smul.addr %s907, 2
          %s909 = scalar_lea.hbm %s3, %s908
          %s911 = sshll.u32 %s901, 4
          %s912 = int_to_ptr.vmem [resolvable:$true] %s911
          %s913 = sshll.u32 %s909, 4
          %s914 = int_to_ptr.hbm [resolvable:$true] %s913
          %916 = dma.vmem_to_hbm [thread:$0]  %s912, 64, %s914, %s898
        $region40: #{tpu_custom_call.1} parent=31 // pred_fallthru
          _
      $region32: #{tpu_custom_call.1} parent=5 // pred_fallthru
        _
      %p917 = scmp.le.s32.totalorder 2, %s15
      // Predicated region
      $region41: #{tpu_custom_call.1} parent=5 // pred_check
        %p918 = pneg %p917
      $region42: #{tpu_custom_call.1} parent=5 // pred_check_branch
        %920 = sbr.rel (%p918) target = $region44
      $region43: #{tpu_custom_call.1} parent=5 // pred_region
        %s921 = ssub.s32 %s15, 2
        // Predicated region
        $region45: #{tpu_custom_call.1} parent=43 // pred_check
          %p922 = pneg %p112
        $region46: #{tpu_custom_call.1} parent=43 // pred_check_branch
          %924 = sbr.rel (%p922) target = $region48
        $region47: #{tpu_custom_call.1} parent=43 // pred_region
          %s925 = sand.u32 %s97, 1
          %s926 = scalar_lea.sflag [#allocation5], %s925
          %s927 = sand.u32 %s97, 1
          %s928 = smul.addr %s927, 4
          %s929 = scalar_lea.vmem [#allocation6], %s928
          %931 = dma.done %s926, 64
        $region48: #{tpu_custom_call.1} parent=43 // pred_fallthru
          _
      $region44: #{tpu_custom_call.1} parent=5 // pred_fallthru
        _
    $region6: #{tpu_custom_call.1} parent=1 // loop_footer
      %s19 = sadd.s32 1, %s15
    $region7: #{tpu_custom_call.1} parent=1 // loop_footer_branch
      %14 = sbr.rel target = $region3
    $region8: #{tpu_custom_call.1} parent=1 // loop_exit
      _
    %932 = vsyncpa [#allocation4], 1
    %s933 = scalar_lea.sflag [#allocation4], 1
    %934 = vsyncpa %s933, 1
    %935 = vsyncpa [#allocation5], 1
    %s936 = scalar_lea.sflag [#allocation5], 1
    %937 = vsyncpa %s936, 1

</llo_original>
